<compile_context>
chip_gen: v5e
topology: v5e:2x2
jax: 0.10.0
libtpu: 0.0.40
codegen_flags: <defaults>
</compile_context>

<pallas_src>
import functools

import jax
import jax.numpy as jnp
from jax import lax
from jax.experimental import pallas as pl
from jax.experimental.pallas import tpu as pltpu


def resblock_kernel(x_ref, w1_ref, b1_ref, w2_ref, b2_ref, o_ref, *, H, W, K):
    # x_ref : (N*C, H*W)    rows = (image, in-channel) planes; lanes = that image's H*W
    # w1_ref: (K, K, N*C, N*C)  per-tap channel matrices, block-diagonal over the batch
    # b1_ref: (N*C, 1)
    # w2_ref: (K, K, N*C, N*C)
    # b2_ref: (N*C, 1)
    # o_ref : (N*C, H*W)
    NC, HW = x_ref.shape
    p = (K - 1) // 2
    assert K == 3 and p == 1, "masks below are specialised to kernel_size=3 / pad=1"

    f32 = jnp.float32

    # Per-lane (row, col) coordinates inside each image, built once at full
    # (NC, HW) shape so no broadcast is re-emitted inside the tap loops.
    lane = lax.broadcasted_iota(jnp.int32, (NC, HW), 1)
    if W & (W - 1) == 0:                         # power-of-two fast path
        col = lane & (W - 1)
        row = lane >> (W.bit_length() - 1)       # lane < H*W, so row in [0, H)
    else:                                        # generic fallback (untraced here)
        col = lane % W
        row = lane // W
    not_l = (col != 0).astype(f32)               # source col w-1 invalid at w == 0
    not_r = (col != W - 1).astype(f32)           # source col w+1 invalid at w == W-1
    not_t = (row != 0).astype(f32)               # source row h-1 invalid at h == 0
    not_b = (row != H - 1).astype(f32)           # source row h+1 invalid at h == H-1
    col_mask = (not_l, None, not_r)              # indexed by dx
    row_mask = (not_t, None, not_b)              # indexed by dy

    def conv3x3(x, w_ref, b):
        """'SAME' 3x3 conv of each sublane-row's own HxW image, bias included."""
        acc = jnp.broadcast_to(b, (NC, HW)).astype(f32)   # bias folded into acc init
        for dy in range(K):
            for dx in range(K):
                s = (dy - p) * W + (dx - p)      # static flat source offset
                # xs[i] = x[(i + s) mod HW].  Every wrapped entry (|s| <= W+1)
                # lands only where the row and/or col mask is zero (top/bottom
                # rows for the +-W part, left/right cols for the +-1 part;
                # corners are killed by the product of both masks), so no
                # wraparound value ever leaks into the output.
                xs = x if s == 0 else pltpu.roll(x, shift=(-s) % HW, axis=1)
                if row_mask[dy] is not None:
                    xs = xs * row_mask[dy]
                if col_mask[dx] is not None:
                    xs = xs * col_mask[dx]
                acc = acc + jnp.dot(w_ref[dy, dx], xs,
                                    preferred_element_type=f32)
        return acc

    x = x_ref[...].astype(f32)
    # conv1 + bias -> IdentityNorm (no-op) -> ReLU -> Dropout (eval: no-op)
    y = jnp.maximum(conv3x3(x, w1_ref, b1_ref[...]), 0.0)
    # conv2 + bias -> IdentityNorm (no-op) -> identity shortcut (stride == 1)
    y = conv3x3(y, w2_ref, b2_ref[...]) + x
    o_ref[...] = y.astype(o_ref.dtype)           # full, dense (8, 256) store


@jax.jit
def resblock_forward(x_nchw, w1, b1, w2, b2):
    """ResBlock forward. x_nchw: (N, C, H, W); weights PyTorch-style (Cout, Cin, K, K)."""
    N, Cin, H, W = x_nchw.shape
    Cout, Cin2, K, K2 = w1.shape
    assert Cout == Cin == Cin2, "stride=1 / channel_span=1 ResBlock requires Cout == Cin"
    assert K == K2 == 3, "kernel specialised to kernel_size=3"
    NC, HW = N * Cin, H * W

    # Free contiguous reshape: (N, C, H, W) -> (N*C, H*W).  Each sublane row
    # holds one (image, channel) plane; its H*W pixels sit on the lane axis.
    x_flat = x_nchw.reshape(NC, HW).astype(jnp.float32)

    # (Cout, Cin, K, K) -> per-tap (K, K, Cout, Cin), then block-diagonal over
    # the batch -> (K, K, N*Cout, N*Cin) so one dot per tap covers all images.
    eye_n = jnp.eye(N, dtype=jnp.float32)

    def block_diag_taps(w):
        wt = jnp.transpose(w, (2, 3, 0, 1)).astype(jnp.float32)      # (K,K,Cout,Cin)
        wb = jnp.einsum('ab,klij->klaibj', eye_n, wt)                # (K,K,N,Cout,N,Cin)
        return wb.reshape(K, K, N * Cout, N * Cin)

    w1_b = block_diag_taps(w1)
    w2_b = block_diag_taps(w2)
    b1_b = jnp.tile(b1.astype(jnp.float32), N).reshape(NC, 1)
    b2_b = jnp.tile(b2.astype(jnp.float32), N).reshape(NC, 1)

    kernel = functools.partial(resblock_kernel, H=H, W=W, K=K)
    out_flat = pl.pallas_call(
        kernel,
        out_shape=jax.ShapeDtypeStruct((NC, HW), jnp.float32),
        in_specs=[pl.BlockSpec(memory_space=pltpu.MemorySpace.VMEM)
                  for _ in range(5)],
        out_specs=pl.BlockSpec(memory_space=pltpu.MemorySpace.VMEM),
    )(x_flat, w1_b, b1_b, w2_b, b2_b)

    return out_flat.reshape(N, Cout, H, W)


def ref_resblock(x_nchw, w1, b1, w2, b2):
    """Pure-JAX reference (lax.conv) for verification."""
    x = jnp.transpose(x_nchw, (0, 2, 3, 1)).astype(jnp.float32)
    dn = ("NHWC", "HWIO", "NHWC")
    w1_h = jnp.transpose(w1, (2, 3, 1, 0)).astype(jnp.float32)
    w2_h = jnp.transpose(w2, (2, 3, 1, 0)).astype(jnp.float32)
    y = lax.conv_general_dilated(x, w1_h, (1, 1), "SAME", dimension_numbers=dn)
    y = jnp.maximum(y + b1.reshape(1, 1, 1, -1), 0.0)
    y = lax.conv_general_dilated(y, w2_h, (1, 1), "SAME", dimension_numbers=dn)
    y = y + b2.reshape(1, 1, 1, -1) + x
    return jnp.transpose(y, (0, 3, 1, 2))


if __name__ == "__main__":
    key = jax.random.PRNGKey(0)
    k_x, k_w1, k_b1, k_w2, k_b2 = jax.random.split(key, 5)

    N, C, H, W = 2, 4, 16, 16     # in_channels=4, stride=1 -> out_channels=4
    K = 3

    x = jax.random.normal(k_x, (N, C, H, W), jnp.float32)

    # Deterministic parameter init (PyTorch-conv-style uniform bounds).
    fan_in = C * K * K
    bound = 1.0 / (fan_in ** 0.5)
    w1 = jax.random.uniform(k_w1, (C, C, K, K), jnp.float32, -bound, bound)
    b1 = jax.random.uniform(k_b1, (C,), jnp.float32, -bound, bound)
    w2 = jax.random.uniform(k_w2, (C, C, K, K), jnp.float32, -bound, bound)
    b2 = jax.random.uniform(k_b2, (C,), jnp.float32, -bound, bound)

    out = resblock_forward(x, w1, b1, w2, b2)
    jax.block_until_ready(out)

    ref = ref_resblock(x, w1, b1, w2, b2)
    err = float(jnp.max(jnp.abs(out - ref)))
    assert out.shape == (N, C, H, W)
    assert jnp.allclose(out, ref, atol=1e-4, rtol=1e-4), f"max abs err {err}"

    print("KERNEL_OK")
</pallas_src>

<mosaic_0001>
module attributes {stable_mosaic.version = 11 : i64} {
  func.func @resblock_kernel(%arg0: memref<8x256xf32, #tpu.memory_space<vmem>>, %arg1: memref<3x3x8x8xf32, #tpu.memory_space<vmem>>, %arg2: memref<8x1xf32, #tpu.memory_space<vmem>>, %arg3: memref<3x3x8x8xf32, #tpu.memory_space<vmem>>, %arg4: memref<8x1xf32, #tpu.memory_space<vmem>>, %arg5: memref<8x256xf32, #tpu.memory_space<vmem>>) attributes {dimension_semantics = [], scalar_prefetch = 0 : i64, scratch_operands = 0 : i64, tpu.core_type = #tpu.core_type<tc>} {
    %0 = tpu.iota {dimensions = array<i32: 1>} : vector<8x256xi32>
    %c15_i32 = arith.constant 15 : i32
    %1 = vector.broadcast %c15_i32 : i32 to vector<8x256xi32>
    %2 = arith.andi %0, %1 : vector<8x256xi32>
    %c4_i32 = arith.constant 4 : i32
    %3 = vector.broadcast %c4_i32 : i32 to vector<8x256xi32>
    %4 = arith.shrsi %0, %3 : vector<8x256xi32>
    %c0_i32 = arith.constant 0 : i32
    %5 = vector.broadcast %c0_i32 : i32 to vector<8x256xi32>
    %6 = arith.cmpi ne, %2, %5 : vector<8x256xi32>
    %7 = arith.extui %6 : vector<8x256xi1> to vector<8x256xi32>
    %8 = arith.sitofp %7 : vector<8x256xi32> to vector<8x256xf32>
    %c15_i32_0 = arith.constant 15 : i32
    %9 = vector.broadcast %c15_i32_0 : i32 to vector<8x256xi32>
    %10 = arith.cmpi ne, %2, %9 : vector<8x256xi32>
    %11 = arith.extui %10 : vector<8x256xi1> to vector<8x256xi32>
    %12 = arith.sitofp %11 : vector<8x256xi32> to vector<8x256xf32>
    %c0_i32_1 = arith.constant 0 : i32
    %13 = vector.broadcast %c0_i32_1 : i32 to vector<8x256xi32>
    %14 = arith.cmpi ne, %4, %13 : vector<8x256xi32>
    %15 = arith.extui %14 : vector<8x256xi1> to vector<8x256xi32>
    %16 = arith.sitofp %15 : vector<8x256xi32> to vector<8x256xf32>
    %c15_i32_2 = arith.constant 15 : i32
    %17 = vector.broadcast %c15_i32_2 : i32 to vector<8x256xi32>
    %18 = arith.cmpi ne, %4, %17 : vector<8x256xi32>
    %19 = arith.extui %18 : vector<8x256xi1> to vector<8x256xi32>
    %20 = arith.sitofp %19 : vector<8x256xi32> to vector<8x256xf32>
    %c0 = arith.constant 0 : index
    %c0_3 = arith.constant 0 : index
    %21 = vector.load %arg0[%c0, %c0_3] : memref<8x256xf32, #tpu.memory_space<vmem>>, vector<8x256xf32>
    %c0_4 = arith.constant 0 : index
    %c0_5 = arith.constant 0 : index
    %22 = vector.load %arg2[%c0_4, %c0_5] : memref<8x1xf32, #tpu.memory_space<vmem>>, vector<8x1xf32>
    %23 = vector.shape_cast %22 : vector<8x1xf32> to vector<8x1xf32>
    %24 = vector.broadcast %23 : vector<8x1xf32> to vector<8x256xf32>
    %c17_i32 = arith.constant 17 : i32
    %25 = tpu.dynamic_rotate %21 by %c17_i32 dim 1 : vector<8x256xf32>, i32 -> vector<8x256xf32>
    %26 = arith.mulf %25, %16 : vector<8x256xf32>
    %27 = arith.mulf %26, %8 : vector<8x256xf32>
    %c0_6 = arith.constant 0 : index
    %c0_7 = arith.constant 0 : index
    %c0_8 = arith.constant 0 : index
    %c0_9 = arith.constant 0 : index
    %28 = vector.load %arg1[%c0_6, %c0_7, %c0_8, %c0_9] : memref<3x3x8x8xf32, #tpu.memory_space<vmem>>, vector<1x1x8x8xf32>
    %29 = vector.shape_cast %28 : vector<1x1x8x8xf32> to vector<8x8xf32>
    %cst = arith.constant dense<0.000000e+00> : vector<8x256xf32>
    %30 = tpu.matmul %29, %27, %cst {dimension_numbers = #tpu.dot_dimension_numbers<[1], [0], [0], [1], [0, 0, 1, 1], [], []>} : vector<8x8xf32>, vector<8x256xf32>, vector<8x256xf32> -> vector<8x256xf32>
    %31 = arith.addf %24, %30 : vector<8x256xf32>
    %c16_i32 = arith.constant 16 : i32
    %32 = tpu.dynamic_rotate %21 by %c16_i32 dim 1 : vector<8x256xf32>, i32 -> vector<8x256xf32>
    %33 = arith.mulf %32, %16 : vector<8x256xf32>
    %c0_10 = arith.constant 0 : index
    %c1 = arith.constant 1 : index
    %c0_11 = arith.constant 0 : index
    %c0_12 = arith.constant 0 : index
    %34 = vector.load %arg1[%c0_10, %c1, %c0_11, %c0_12] : memref<3x3x8x8xf32, #tpu.memory_space<vmem>>, vector<1x1x8x8xf32>
    %35 = vector.shape_cast %34 : vector<1x1x8x8xf32> to vector<8x8xf32>
    %cst_13 = arith.constant dense<0.000000e+00> : vector<8x256xf32>
    %36 = tpu.matmul %35, %33, %cst_13 {dimension_numbers = #tpu.dot_dimension_numbers<[1], [0], [0], [1], [0, 0, 1, 1], [], []>} : vector<8x8xf32>, vector<8x256xf32>, vector<8x256xf32> -> vector<8x256xf32>
    %37 = arith.addf %31, %36 : vector<8x256xf32>
    %c15_i32_14 = arith.constant 15 : i32
    %38 = tpu.dynamic_rotate %21 by %c15_i32_14 dim 1 : vector<8x256xf32>, i32 -> vector<8x256xf32>
    %39 = arith.mulf %38, %16 : vector<8x256xf32>
    %40 = arith.mulf %39, %12 : vector<8x256xf32>
    %c0_15 = arith.constant 0 : index
    %c2 = arith.constant 2 : index
    %c0_16 = arith.constant 0 : index
    %c0_17 = arith.constant 0 : index
    %41 = vector.load %arg1[%c0_15, %c2, %c0_16, %c0_17] : memref<3x3x8x8xf32, #tpu.memory_space<vmem>>, vector<1x1x8x8xf32>
    %42 = vector.shape_cast %41 : vector<1x1x8x8xf32> to vector<8x8xf32>
    %cst_18 = arith.constant dense<0.000000e+00> : vector<8x256xf32>
    %43 = tpu.matmul %42, %40, %cst_18 {dimension_numbers = #tpu.dot_dimension_numbers<[1], [0], [0], [1], [0, 0, 1, 1], [], []>} : vector<8x8xf32>, vector<8x256xf32>, vector<8x256xf32> -> vector<8x256xf32>
    %44 = arith.addf %37, %43 : vector<8x256xf32>
    %c1_i32 = arith.constant 1 : i32
    %45 = tpu.dynamic_rotate %21 by %c1_i32 dim 1 : vector<8x256xf32>, i32 -> vector<8x256xf32>
    %46 = arith.mulf %45, %8 : vector<8x256xf32>
    %c1_19 = arith.constant 1 : index
    %c0_20 = arith.constant 0 : index
    %c0_21 = arith.constant 0 : index
    %c0_22 = arith.constant 0 : index
    %47 = vector.load %arg1[%c1_19, %c0_20, %c0_21, %c0_22] : memref<3x3x8x8xf32, #tpu.memory_space<vmem>>, vector<1x1x8x8xf32>
    %48 = vector.shape_cast %47 : vector<1x1x8x8xf32> to vector<8x8xf32>
    %cst_23 = arith.constant dense<0.000000e+00> : vector<8x256xf32>
    %49 = tpu.matmul %48, %46, %cst_23 {dimension_numbers = #tpu.dot_dimension_numbers<[1], [0], [0], [1], [0, 0, 1, 1], [], []>} : vector<8x8xf32>, vector<8x256xf32>, vector<8x256xf32> -> vector<8x256xf32>
    %50 = arith.addf %44, %49 : vector<8x256xf32>
    %c1_24 = arith.constant 1 : index
    %c1_25 = arith.constant 1 : index
    %c0_26 = arith.constant 0 : index
    %c0_27 = arith.constant 0 : index
    %51 = vector.load %arg1[%c1_24, %c1_25, %c0_26, %c0_27] : memref<3x3x8x8xf32, #tpu.memory_space<vmem>>, vector<1x1x8x8xf32>
    %52 = vector.shape_cast %51 : vector<1x1x8x8xf32> to vector<8x8xf32>
    %cst_28 = arith.constant dense<0.000000e+00> : vector<8x256xf32>
    %53 = tpu.matmul %52, %21, %cst_28 {dimension_numbers = #tpu.dot_dimension_numbers<[1], [0], [0], [1], [0, 0, 1, 1], [], []>} : vector<8x8xf32>, vector<8x256xf32>, vector<8x256xf32> -> vector<8x256xf32>
    %54 = arith.addf %50, %53 : vector<8x256xf32>
    %c255_i32 = arith.constant 255 : i32
    %55 = tpu.dynamic_rotate %21 by %c255_i32 dim 1 : vector<8x256xf32>, i32 -> vector<8x256xf32>
    %56 = arith.mulf %55, %12 : vector<8x256xf32>
    %c1_29 = arith.constant 1 : index
    %c2_30 = arith.constant 2 : index
    %c0_31 = arith.constant 0 : index
    %c0_32 = arith.constant 0 : index
    %57 = vector.load %arg1[%c1_29, %c2_30, %c0_31, %c0_32] : memref<3x3x8x8xf32, #tpu.memory_space<vmem>>, vector<1x1x8x8xf32>
    %58 = vector.shape_cast %57 : vector<1x1x8x8xf32> to vector<8x8xf32>
    %cst_33 = arith.constant dense<0.000000e+00> : vector<8x256xf32>
    %59 = tpu.matmul %58, %56, %cst_33 {dimension_numbers = #tpu.dot_dimension_numbers<[1], [0], [0], [1], [0, 0, 1, 1], [], []>} : vector<8x8xf32>, vector<8x256xf32>, vector<8x256xf32> -> vector<8x256xf32>
    %60 = arith.addf %54, %59 : vector<8x256xf32>
    %c241_i32 = arith.constant 241 : i32
    %61 = tpu.dynamic_rotate %21 by %c241_i32 dim 1 : vector<8x256xf32>, i32 -> vector<8x256xf32>
    %62 = arith.mulf %61, %20 : vector<8x256xf32>
    %63 = arith.mulf %62, %8 : vector<8x256xf32>
    %c2_34 = arith.constant 2 : index
    %c0_35 = arith.constant 0 : index
    %c0_36 = arith.constant 0 : index
    %c0_37 = arith.constant 0 : index
    %64 = vector.load %arg1[%c2_34, %c0_35, %c0_36, %c0_37] : memref<3x3x8x8xf32, #tpu.memory_space<vmem>>, vector<1x1x8x8xf32>
    %65 = vector.shape_cast %64 : vector<1x1x8x8xf32> to vector<8x8xf32>
    %cst_38 = arith.constant dense<0.000000e+00> : vector<8x256xf32>
    %66 = tpu.matmul %65, %63, %cst_38 {dimension_numbers = #tpu.dot_dimension_numbers<[1], [0], [0], [1], [0, 0, 1, 1], [], []>} : vector<8x8xf32>, vector<8x256xf32>, vector<8x256xf32> -> vector<8x256xf32>
    %67 = arith.addf %60, %66 : vector<8x256xf32>
    %c240_i32 = arith.constant 240 : i32
    %68 = tpu.dynamic_rotate %21 by %c240_i32 dim 1 : vector<8x256xf32>, i32 -> vector<8x256xf32>
    %69 = arith.mulf %68, %20 : vector<8x256xf32>
    %c2_39 = arith.constant 2 : index
    %c1_40 = arith.constant 1 : index
    %c0_41 = arith.constant 0 : index
    %c0_42 = arith.constant 0 : index
    %70 = vector.load %arg1[%c2_39, %c1_40, %c0_41, %c0_42] : memref<3x3x8x8xf32, #tpu.memory_space<vmem>>, vector<1x1x8x8xf32>
    %71 = vector.shape_cast %70 : vector<1x1x8x8xf32> to vector<8x8xf32>
    %cst_43 = arith.constant dense<0.000000e+00> : vector<8x256xf32>
    %72 = tpu.matmul %71, %69, %cst_43 {dimension_numbers = #tpu.dot_dimension_numbers<[1], [0], [0], [1], [0, 0, 1, 1], [], []>} : vector<8x8xf32>, vector<8x256xf32>, vector<8x256xf32> -> vector<8x256xf32>
    %73 = arith.addf %67, %72 : vector<8x256xf32>
    %c239_i32 = arith.constant 239 : i32
    %74 = tpu.dynamic_rotate %21 by %c239_i32 dim 1 : vector<8x256xf32>, i32 -> vector<8x256xf32>
    %75 = arith.mulf %74, %20 : vector<8x256xf32>
    %76 = arith.mulf %75, %12 : vector<8x256xf32>
    %c2_44 = arith.constant 2 : index
    %c2_45 = arith.constant 2 : index
    %c0_46 = arith.constant 0 : index
    %c0_47 = arith.constant 0 : index
    %77 = vector.load %arg1[%c2_44, %c2_45, %c0_46, %c0_47] : memref<3x3x8x8xf32, #tpu.memory_space<vmem>>, vector<1x1x8x8xf32>
    %78 = vector.shape_cast %77 : vector<1x1x8x8xf32> to vector<8x8xf32>
    %cst_48 = arith.constant dense<0.000000e+00> : vector<8x256xf32>
    %79 = tpu.matmul %78, %76, %cst_48 {dimension_numbers = #tpu.dot_dimension_numbers<[1], [0], [0], [1], [0, 0, 1, 1], [], []>} : vector<8x8xf32>, vector<8x256xf32>, vector<8x256xf32> -> vector<8x256xf32>
    %80 = arith.addf %73, %79 : vector<8x256xf32>
    %cst_49 = arith.constant 0.000000e+00 : f32
    %81 = vector.broadcast %cst_49 : f32 to vector<8x256xf32>
    %82 = arith.maximumf %80, %81 : vector<8x256xf32>
    %c0_50 = arith.constant 0 : index
    %c0_51 = arith.constant 0 : index
    %83 = vector.load %arg4[%c0_50, %c0_51] : memref<8x1xf32, #tpu.memory_space<vmem>>, vector<8x1xf32>
    %84 = vector.shape_cast %83 : vector<8x1xf32> to vector<8x1xf32>
    %85 = vector.broadcast %84 : vector<8x1xf32> to vector<8x256xf32>
    %c17_i32_52 = arith.constant 17 : i32
    %86 = tpu.dynamic_rotate %82 by %c17_i32_52 dim 1 : vector<8x256xf32>, i32 -> vector<8x256xf32>
    %87 = arith.mulf %86, %16 : vector<8x256xf32>
    %88 = arith.mulf %87, %8 : vector<8x256xf32>
    %c0_53 = arith.constant 0 : index
    %c0_54 = arith.constant 0 : index
    %c0_55 = arith.constant 0 : index
    %c0_56 = arith.constant 0 : index
    %89 = vector.load %arg3[%c0_53, %c0_54, %c0_55, %c0_56] : memref<3x3x8x8xf32, #tpu.memory_space<vmem>>, vector<1x1x8x8xf32>
    %90 = vector.shape_cast %89 : vector<1x1x8x8xf32> to vector<8x8xf32>
    %cst_57 = arith.constant dense<0.000000e+00> : vector<8x256xf32>
    %91 = tpu.matmul %90, %88, %cst_57 {dimension_numbers = #tpu.dot_dimension_numbers<[1], [0], [0], [1], [0, 0, 1, 1], [], []>} : vector<8x8xf32>, vector<8x256xf32>, vector<8x256xf32> -> vector<8x256xf32>
    %92 = arith.addf %85, %91 : vector<8x256xf32>
    %c16_i32_58 = arith.constant 16 : i32
    %93 = tpu.dynamic_rotate %82 by %c16_i32_58 dim 1 : vector<8x256xf32>, i32 -> vector<8x256xf32>
    %94 = arith.mulf %93, %16 : vector<8x256xf32>
    %c0_59 = arith.constant 0 : index
    %c1_60 = arith.constant 1 : index
    %c0_61 = arith.constant 0 : index
    %c0_62 = arith.constant 0 : index
    %95 = vector.load %arg3[%c0_59, %c1_60, %c0_61, %c0_62] : memref<3x3x8x8xf32, #tpu.memory_space<vmem>>, vector<1x1x8x8xf32>
    %96 = vector.shape_cast %95 : vector<1x1x8x8xf32> to vector<8x8xf32>
    %cst_63 = arith.constant dense<0.000000e+00> : vector<8x256xf32>
    %97 = tpu.matmul %96, %94, %cst_63 {dimension_numbers = #tpu.dot_dimension_numbers<[1], [0], [0], [1], [0, 0, 1, 1], [], []>} : vector<8x8xf32>, vector<8x256xf32>, vector<8x256xf32> -> vector<8x256xf32>
    %98 = arith.addf %92, %97 : vector<8x256xf32>
    %c15_i32_64 = arith.constant 15 : i32
    %99 = tpu.dynamic_rotate %82 by %c15_i32_64 dim 1 : vector<8x256xf32>, i32 -> vector<8x256xf32>
    %100 = arith.mulf %99, %16 : vector<8x256xf32>
    %101 = arith.mulf %100, %12 : vector<8x256xf32>
    %c0_65 = arith.constant 0 : index
    %c2_66 = arith.constant 2 : index
    %c0_67 = arith.constant 0 : index
    %c0_68 = arith.constant 0 : index
    %102 = vector.load %arg3[%c0_65, %c2_66, %c0_67, %c0_68] : memref<3x3x8x8xf32, #tpu.memory_space<vmem>>, vector<1x1x8x8xf32>
    %103 = vector.shape_cast %102 : vector<1x1x8x8xf32> to vector<8x8xf32>
    %cst_69 = arith.constant dense<0.000000e+00> : vector<8x256xf32>
    %104 = tpu.matmul %103, %101, %cst_69 {dimension_numbers = #tpu.dot_dimension_numbers<[1], [0], [0], [1], [0, 0, 1, 1], [], []>} : vector<8x8xf32>, vector<8x256xf32>, vector<8x256xf32> -> vector<8x256xf32>
    %105 = arith.addf %98, %104 : vector<8x256xf32>
    %c1_i32_70 = arith.constant 1 : i32
    %106 = tpu.dynamic_rotate %82 by %c1_i32_70 dim 1 : vector<8x256xf32>, i32 -> vector<8x256xf32>
    %107 = arith.mulf %106, %8 : vector<8x256xf32>
    %c1_71 = arith.constant 1 : index
    %c0_72 = arith.constant 0 : index
    %c0_73 = arith.constant 0 : index
    %c0_74 = arith.constant 0 : index
    %108 = vector.load %arg3[%c1_71, %c0_72, %c0_73, %c0_74] : memref<3x3x8x8xf32, #tpu.memory_space<vmem>>, vector<1x1x8x8xf32>
    %109 = vector.shape_cast %108 : vector<1x1x8x8xf32> to vector<8x8xf32>
    %cst_75 = arith.constant dense<0.000000e+00> : vector<8x256xf32>
    %110 = tpu.matmul %109, %107, %cst_75 {dimension_numbers = #tpu.dot_dimension_numbers<[1], [0], [0], [1], [0, 0, 1, 1], [], []>} : vector<8x8xf32>, vector<8x256xf32>, vector<8x256xf32> -> vector<8x256xf32>
    %111 = arith.addf %105, %110 : vector<8x256xf32>
    %c1_76 = arith.constant 1 : index
    %c1_77 = arith.constant 1 : index
    %c0_78 = arith.constant 0 : index
    %c0_79 = arith.constant 0 : index
    %112 = vector.load %arg3[%c1_76, %c1_77, %c0_78, %c0_79] : memref<3x3x8x8xf32, #tpu.memory_space<vmem>>, vector<1x1x8x8xf32>
    %113 = vector.shape_cast %112 : vector<1x1x8x8xf32> to vector<8x8xf32>
    %cst_80 = arith.constant dense<0.000000e+00> : vector<8x256xf32>
    %114 = tpu.matmul %113, %82, %cst_80 {dimension_numbers = #tpu.dot_dimension_numbers<[1], [0], [0], [1], [0, 0, 1, 1], [], []>} : vector<8x8xf32>, vector<8x256xf32>, vector<8x256xf32> -> vector<8x256xf32>
    %115 = arith.addf %111, %114 : vector<8x256xf32>
    %c255_i32_81 = arith.constant 255 : i32
    %116 = tpu.dynamic_rotate %82 by %c255_i32_81 dim 1 : vector<8x256xf32>, i32 -> vector<8x256xf32>
    %117 = arith.mulf %116, %12 : vector<8x256xf32>
    %c1_82 = arith.constant 1 : index
    %c2_83 = arith.constant 2 : index
    %c0_84 = arith.constant 0 : index
    %c0_85 = arith.constant 0 : index
    %118 = vector.load %arg3[%c1_82, %c2_83, %c0_84, %c0_85] : memref<3x3x8x8xf32, #tpu.memory_space<vmem>>, vector<1x1x8x8xf32>
    %119 = vector.shape_cast %118 : vector<1x1x8x8xf32> to vector<8x8xf32>
    %cst_86 = arith.constant dense<0.000000e+00> : vector<8x256xf32>
    %120 = tpu.matmul %119, %117, %cst_86 {dimension_numbers = #tpu.dot_dimension_numbers<[1], [0], [0], [1], [0, 0, 1, 1], [], []>} : vector<8x8xf32>, vector<8x256xf32>, vector<8x256xf32> -> vector<8x256xf32>
    %121 = arith.addf %115, %120 : vector<8x256xf32>
    %c241_i32_87 = arith.constant 241 : i32
    %122 = tpu.dynamic_rotate %82 by %c241_i32_87 dim 1 : vector<8x256xf32>, i32 -> vector<8x256xf32>
    %123 = arith.mulf %122, %20 : vector<8x256xf32>
    %124 = arith.mulf %123, %8 : vector<8x256xf32>
    %c2_88 = arith.constant 2 : index
    %c0_89 = arith.constant 0 : index
    %c0_90 = arith.constant 0 : index
    %c0_91 = arith.constant 0 : index
    %125 = vector.load %arg3[%c2_88, %c0_89, %c0_90, %c0_91] : memref<3x3x8x8xf32, #tpu.memory_space<vmem>>, vector<1x1x8x8xf32>
    %126 = vector.shape_cast %125 : vector<1x1x8x8xf32> to vector<8x8xf32>
    %cst_92 = arith.constant dense<0.000000e+00> : vector<8x256xf32>
    %127 = tpu.matmul %126, %124, %cst_92 {dimension_numbers = #tpu.dot_dimension_numbers<[1], [0], [0], [1], [0, 0, 1, 1], [], []>} : vector<8x8xf32>, vector<8x256xf32>, vector<8x256xf32> -> vector<8x256xf32>
    %128 = arith.addf %121, %127 : vector<8x256xf32>
    %c240_i32_93 = arith.constant 240 : i32
    %129 = tpu.dynamic_rotate %82 by %c240_i32_93 dim 1 : vector<8x256xf32>, i32 -> vector<8x256xf32>
    %130 = arith.mulf %129, %20 : vector<8x256xf32>
    %c2_94 = arith.constant 2 : index
    %c1_95 = arith.constant 1 : index
    %c0_96 = arith.constant 0 : index
    %c0_97 = arith.constant 0 : index
    %131 = vector.load %arg3[%c2_94, %c1_95, %c0_96, %c0_97] : memref<3x3x8x8xf32, #tpu.memory_space<vmem>>, vector<1x1x8x8xf32>
    %132 = vector.shape_cast %131 : vector<1x1x8x8xf32> to vector<8x8xf32>
    %cst_98 = arith.constant dense<0.000000e+00> : vector<8x256xf32>
    %133 = tpu.matmul %132, %130, %cst_98 {dimension_numbers = #tpu.dot_dimension_numbers<[1], [0], [0], [1], [0, 0, 1, 1], [], []>} : vector<8x8xf32>, vector<8x256xf32>, vector<8x256xf32> -> vector<8x256xf32>
    %134 = arith.addf %128, %133 : vector<8x256xf32>
    %c239_i32_99 = arith.constant 239 : i32
    %135 = tpu.dynamic_rotate %82 by %c239_i32_99 dim 1 : vector<8x256xf32>, i32 -> vector<8x256xf32>
    %136 = arith.mulf %135, %20 : vector<8x256xf32>
    %137 = arith.mulf %136, %12 : vector<8x256xf32>
    %c2_100 = arith.constant 2 : index
    %c2_101 = arith.constant 2 : index
    %c0_102 = arith.constant 0 : index
    %c0_103 = arith.constant 0 : index
    %138 = vector.load %arg3[%c2_100, %c2_101, %c0_102, %c0_103] : memref<3x3x8x8xf32, #tpu.memory_space<vmem>>, vector<1x1x8x8xf32>
    %139 = vector.shape_cast %138 : vector<1x1x8x8xf32> to vector<8x8xf32>
    %cst_104 = arith.constant dense<0.000000e+00> : vector<8x256xf32>
    %140 = tpu.matmul %139, %137, %cst_104 {dimension_numbers = #tpu.dot_dimension_numbers<[1], [0], [0], [1], [0, 0, 1, 1], [], []>} : vector<8x8xf32>, vector<8x256xf32>, vector<8x256xf32> -> vector<8x256xf32>
    %141 = arith.addf %134, %140 : vector<8x256xf32>
    %142 = arith.addf %141, %21 : vector<8x256xf32>
    %c0_105 = arith.constant 0 : index
    %c0_106 = arith.constant 0 : index
    %143 = vector.load %arg5[%c0_105, %c0_106] : memref<8x256xf32, #tpu.memory_space<vmem>>, vector<8x256xf32>
    tpu.vector_store %arg5[%c0_105, %c0_106], %142 {strides = array<i32>} : memref<8x256xf32, #tpu.memory_space<vmem>>, vector<8x256xf32>,
    return
  }
}

</mosaic_0001>

<llo_original>
// kernel: tile.13
$region0: #{tile.13}
  #allocation0 [shape = 's32[1]{0}', space=sflag, size = 0x4, scoped, tag = 'scoped memory for tile.13']
  %s0 = inlined_call_operand.vmem [shape: f32[4], index: 0, kind: input, shape index: {}]
  %s1 = inlined_call_operand.vmem [shape: f32[2,4], index: 1, kind: output, shape index: {}]
  // Predicated region
  $region2: #{tile.13} parent=0 // pred_check
    _
  $region3: #{tile.13} parent=0 // pred_check_branch
    %3 = sbr.rel (0) target = $region5
  $region4: #{tile.13} parent=0 // pred_region
    _
  $region5: #{tile.13} parent=0 // pred_fallthru
    _
  %v4 = vld [vmem:[%s0] ss:$0 sm:$0xff]
  %5 = vst [vmem:[%s1] sm:$0x3] %v4

// kernel: tile.0
$region0: #{tile.0}
  %s0 = inlined_call_operand.vmem [shape: f32[2,4], index: 0, kind: input, shape index: {}]
  %s1 = inlined_call_operand.vmem [shape: f32[8,1], index: 1, kind: output, shape index: {}]
  $region1: #{tile.0} parent=0
    #allocation0 [shape = 'u8[4096]{0}', space=vmem, size = 0x1000, scoped, tag = 'scoped mem for input reshape']
    %s3 = ssub.s32 4, 1
    %v4 = vld [vmem:[%s0] sm:%s3]
    %5 = vst [vmem:[#allocation0] sm:%s3] %v4
    %v6 = vld [vmem:[#allocation0] sm:$0x3]
    %vm7 = vcmask 7168
    %8 = vst.msk [vmem:[%s1] ss:$4 sm:$0x3] %vm7, %v6
    %v9 = vld [vmem:[#allocation0] sm:$0x3]
    %10 = vrot.lane.b32.xlu0 %v9, 127
    %v11 = vpop.permute.xlu0 %10
    %vm12 = vcmask 7168
    %s13 = scalar_lea.vmem %s1, 1
    %14 = vst.msk [vmem:[%s13] ss:$4 sm:$0x3] %vm12, %v11
    %v15 = vld [vmem:[#allocation0] sm:$0x3]
    %16 = vrot.lane.b32.xlu0 %v15, 126
    %v17 = vpop.permute.xlu0 %16
    %vm18 = vcmask 7168
    %s19 = scalar_lea.vmem %s1, 2
    %20 = vst.msk [vmem:[%s19] ss:$4 sm:$0x3] %vm18, %v17
    %v21 = vld [vmem:[#allocation0] sm:$0x3]
    %22 = vrot.lane.b32.xlu0 %v21, 125
    %v23 = vpop.permute.xlu0 %22
    %vm24 = vcmask 7168
    %s25 = scalar_lea.vmem %s1, 3
    %26 = vst.msk [vmem:[%s25] ss:$4 sm:$0x3] %vm24, %v23

// kernel: resblock_forward.1
$region0: #{resblock_forward.1}
  #allocation0 [shape = 'u32[]', space=smem, size = 0x4, offset = 0x4, fixed_abs, tag = 'smem constant byte address 0x4 - core index']
  #allocation1 [shape = 'u32[72,128]{1,0:T(1,128)}', space=vmem, size = 0x9000, scoped, tag = 'internal scratch']
  %s0 = inlined_call_operand.vmem [shape: f32[8,256], index: 0, kind: input, shape index: {}]
  %s1 = inlined_call_operand.vmem [shape: f32[3,3,8,8], index: 1, kind: input, shape index: {}]
  %s2 = inlined_call_operand.vmem [shape: f32[8,1], index: 2, kind: input, shape index: {}]
  %s3 = inlined_call_operand.vmem [shape: f32[3,3,8,8], index: 3, kind: input, shape index: {}]
  %s4 = inlined_call_operand.vmem [shape: f32[8,1], index: 4, kind: input, shape index: {}]
  %s5 = inlined_call_operand.vmem [shape: f32[8,256], index: 5, kind: output, shape index: {}]
  %s6 = sld [smem:[#allocation0]]
  $region30: #{resblock_forward.1} parent=0
    _
  %s8 = ssub.s32 1, %s6
  %s9 = scalar_select 0, %s8, %s6
  // Predicated region
  $region2: #{resblock_forward.1} parent=0 // pred_check
    _
  $region3: #{resblock_forward.1} parent=0 // pred_check_branch
    %11 = sbr.rel (0) target = $region5
  $region4: #{resblock_forward.1} parent=0 // pred_region
    _
  $region5: #{resblock_forward.1} parent=0 // pred_fallthru
    _
  // Predicated region
  $region6: #{resblock_forward.1} parent=0 // pred_check
    _
  $region7: #{resblock_forward.1} parent=0 // pred_check_branch
    %13 = sbr.rel (0) target = $region9
  $region8: #{resblock_forward.1} parent=0 // pred_region
    _
  $region9: #{resblock_forward.1} parent=0 // pred_fallthru
    _
  // Predicated region
  $region10: #{resblock_forward.1} parent=0 // pred_check
    _
  $region11: #{resblock_forward.1} parent=0 // pred_check_branch
    %15 = sbr.rel (0) target = $region13
  $region12: #{resblock_forward.1} parent=0 // pred_region
    _
  $region13: #{resblock_forward.1} parent=0 // pred_fallthru
    _
  // Predicated region
  $region14: #{resblock_forward.1} parent=0 // pred_check
    _
  $region15: #{resblock_forward.1} parent=0 // pred_check_branch
    %17 = sbr.rel (0) target = $region17
  $region16: #{resblock_forward.1} parent=0 // pred_region
    _
  $region17: #{resblock_forward.1} parent=0 // pred_fallthru
    _
  // Predicated region
  $region18: #{resblock_forward.1} parent=0 // pred_check
    _
  $region19: #{resblock_forward.1} parent=0 // pred_check_branch
    %19 = sbr.rel (0) target = $region21
  $region20: #{resblock_forward.1} parent=0 // pred_region
    _
  $region21: #{resblock_forward.1} parent=0 // pred_fallthru
    _
  %v20 = vlaneseq
  %v21 = vand.u32 %v20, 127
  %v22 = vadd.s32 %v21, 128
  %v23 = vand.u32 %v21, 15
  %v24 = vand.u32 %v22, 15
  %v25 = vshra.s32 %v21, 4
  %v26 = vshra.s32 %v22, 4
  %vm27 = vcmp.ne.s32.totalorder %v23, 0
  %vm28 = vcmp.ne.s32.totalorder %v24, 0
  %v29 = vsel %vm27, 1, 0
  %v30 = vsel %vm28, 1, 0
  %v31 = vcvt.s32.f32 %v29
  %v32 = vcvt.s32.f32 %v30
  %vm33 = vcmp.ne.s32.totalorder %v23, 15
  %vm34 = vcmp.ne.s32.totalorder %v24, 15
  %v35 = vsel %vm33, 1, 0
  %v36 = vsel %vm34, 1, 0
  %v37 = vcvt.s32.f32 %v35
  %v38 = vcvt.s32.f32 %v36
  %vm39 = vcmp.ne.s32.totalorder %v25, 0
  %vm40 = vcmp.ne.s32.totalorder %v26, 0
  %v41 = vsel %vm39, 1, 0
  %v42 = vsel %vm40, 1, 0
  %v43 = vcvt.s32.f32 %v41
  %v44 = vcvt.s32.f32 %v42
  %vm45 = vcmp.ne.s32.totalorder %v25, 15
  %vm46 = vcmp.ne.s32.totalorder %v26, 15
  %v47 = vsel %vm45, 1, 0
  %v48 = vsel %vm46, 1, 0
  %v49 = vcvt.s32.f32 %v47
  %v50 = vcvt.s32.f32 %v48
  %v51 = vld [vmem:[%s0] sm:$0xff]
  %v52 = vld [vmem:[%s0 + $0x8] sm:$0xff]
  %v53 = vld [vmem:[%s2] sm:$0xff]
  %55 = vset.pattern.permute.xlu0 0
  %56 = vperm.xlu0 %55, %v53
  %v57 = vpop.permute.xlu0 %56
  %59 = vrot.lane.b32.xlu0 %v51, 17
  %v60 = vpop.permute.xlu0 %59
  %61 = vrot.lane.b32.xlu0 %v52, 17
  %v62 = vpop.permute.xlu0 %61
  %vm63 = vcmp.lt.s32.totalorder %v21, 17
  %v64 = vsel %vm63, %v60, %v62
  %v65 = vsel %vm63, %v62, %v60
  %v66 = vmul.f32 %v65, %v43
  %v67 = vmul.f32 %v64, %v44
  %v68 = vmul.f32 %v66, %v31
  %v69 = vmul.f32 %v67, %v32
  %v70 = vld [vmem:[%s1] sm:$0xff]
  %vm71 = vcmask 64512
  %v73 = vsel %vm71, %v70, 0
  %75 = vmatpush.msra.mxu0 0.0
  %76 = vmatpush.msra.mxu0 0.0
  %77 = vmatpush.msra.mxu0 0.0
  %78 = vmatpush.msra.mxu0 0.0
  %79 = vmatpush.msra.mxu0 0.0
  %80 = vmatpush.msra.mxu0 0.0
  %81 = vmatpush.msra.mxu0 0.0
  %82 = vmatpush.msra.mxu0 0.0
  %83 = vmatpush.msra.mxu0 0.0
  %84 = vmatpush.msra.mxu0 0.0
  %85 = vmatpush.msra.mxu0 0.0
  %86 = vmatpush.msra.mxu0 0.0
  %87 = vmatpush.msra.mxu0 0.0
  %88 = vmatpush.msra.mxu0 0.0
  %89 = vmatpush.msra.mxu0 0.0
  %90 = vmatpush.msra.mxu0 %v68
  %91 = vmatmul.f32.gmra.mxu0 %v73
  %v92 = vpop.f32.mrf.mxu0
  %v93 = vadd.f32 0.0, %v92
  %94 = vdwg.mxu0
  %95 = vmatpush.msra.mxu0 0.0
  %96 = vmatpush.msra.mxu0 0.0
  %97 = vmatpush.msra.mxu0 0.0
  %98 = vmatpush.msra.mxu0 0.0
  %99 = vmatpush.msra.mxu0 0.0
  %100 = vmatpush.msra.mxu0 0.0
  %101 = vmatpush.msra.mxu0 0.0
  %102 = vmatpush.msra.mxu0 0.0
  %103 = vmatpush.msra.mxu0 0.0
  %104 = vmatpush.msra.mxu0 0.0
  %105 = vmatpush.msra.mxu0 0.0
  %106 = vmatpush.msra.mxu0 0.0
  %107 = vmatpush.msra.mxu0 0.0
  %108 = vmatpush.msra.mxu0 0.0
  %109 = vmatpush.msra.mxu0 0.0
  %110 = vmatpush.msra.mxu0 %v69
  %111 = vmatmul.f32.gmra.mxu0 %v73
  %v112 = vpop.f32.mrf.mxu0
  %v113 = vadd.f32 0.0, %v112
  %114 = vdwg.mxu0
  %v115 = vadd.f32 %v57, %v93
  %v116 = vadd.f32 %v57, %v113
  %117 = vrot.lane.b32.xlu0 %v51, 16
  %v118 = vpop.permute.xlu0 %117
  %119 = vrot.lane.b32.xlu0 %v52, 16
  %v120 = vpop.permute.xlu0 %119
  %vm121 = vcmp.lt.s32.totalorder %v21, 16
  %v122 = vsel %vm121, %v118, %v120
  %v123 = vsel %vm121, %v120, %v118
  %v124 = vmul.f32 %v123, %v43
  %v125 = vmul.f32 %v122, %v44
  %s126 = scalar_lea.vmem %s1, 8
  %v127 = vld [vmem:[%s126] sm:$0xff]
  %v129 = vsel %vm71, %v127, 0
  %131 = vmatpush.msra.mxu0 0.0
  %132 = vmatpush.msra.mxu0 0.0
  %133 = vmatpush.msra.mxu0 0.0
  %134 = vmatpush.msra.mxu0 0.0
  %135 = vmatpush.msra.mxu0 0.0
  %136 = vmatpush.msra.mxu0 0.0
  %137 = vmatpush.msra.mxu0 0.0
  %138 = vmatpush.msra.mxu0 0.0
  %139 = vmatpush.msra.mxu0 0.0
  %140 = vmatpush.msra.mxu0 0.0
  %141 = vmatpush.msra.mxu0 0.0
  %142 = vmatpush.msra.mxu0 0.0
  %143 = vmatpush.msra.mxu0 0.0
  %144 = vmatpush.msra.mxu0 0.0
  %145 = vmatpush.msra.mxu0 0.0
  %146 = vmatpush.msra.mxu0 %v124
  %147 = vmatmul.f32.gmra.mxu0 %v129
  %v148 = vpop.f32.mrf.mxu0
  %v149 = vadd.f32 0.0, %v148
  %150 = vdwg.mxu0
  %151 = vmatpush.msra.mxu0 0.0
  %152 = vmatpush.msra.mxu0 0.0
  %153 = vmatpush.msra.mxu0 0.0
  %154 = vmatpush.msra.mxu0 0.0
  %155 = vmatpush.msra.mxu0 0.0
  %156 = vmatpush.msra.mxu0 0.0
  %157 = vmatpush.msra.mxu0 0.0
  %158 = vmatpush.msra.mxu0 0.0
  %159 = vmatpush.msra.mxu0 0.0
  %160 = vmatpush.msra.mxu0 0.0
  %161 = vmatpush.msra.mxu0 0.0
  %162 = vmatpush.msra.mxu0 0.0
  %163 = vmatpush.msra.mxu0 0.0
  %164 = vmatpush.msra.mxu0 0.0
  %165 = vmatpush.msra.mxu0 0.0
  %166 = vmatpush.msra.mxu0 %v125
  %167 = vmatmul.f32.gmra.mxu0 %v129
  %v168 = vpop.f32.mrf.mxu0
  %v169 = vadd.f32 0.0, %v168
  %170 = vdwg.mxu0
  %v171 = vadd.f32 %v115, %v149
  %v172 = vadd.f32 %v116, %v169
  %173 = vrot.lane.b32.xlu0 %v51, 15
  %v174 = vpop.permute.xlu0 %173
  %175 = vrot.lane.b32.xlu0 %v52, 15
  %v176 = vpop.permute.xlu0 %175
  %vm177 = vcmp.lt.s32.totalorder %v21, 15
  %v178 = vsel %vm177, %v174, %v176
  %v179 = vsel %vm177, %v176, %v174
  %v180 = vmul.f32 %v179, %v43
  %v181 = vmul.f32 %v178, %v44
  %v182 = vmul.f32 %v180, %v37
  %v183 = vmul.f32 %v181, %v38
  %s184 = scalar_lea.vmem %s1, 16
  %v185 = vld [vmem:[%s184] sm:$0xff]
  %v187 = vsel %vm71, %v185, 0
  %189 = vmatpush.msra.mxu0 0.0
  %190 = vmatpush.msra.mxu0 0.0
  %191 = vmatpush.msra.mxu0 0.0
  %192 = vmatpush.msra.mxu0 0.0
  %193 = vmatpush.msra.mxu0 0.0
  %194 = vmatpush.msra.mxu0 0.0
  %195 = vmatpush.msra.mxu0 0.0
  %196 = vmatpush.msra.mxu0 0.0
  %197 = vmatpush.msra.mxu0 0.0
  %198 = vmatpush.msra.mxu0 0.0
  %199 = vmatpush.msra.mxu0 0.0
  %200 = vmatpush.msra.mxu0 0.0
  %201 = vmatpush.msra.mxu0 0.0
  %202 = vmatpush.msra.mxu0 0.0
  %203 = vmatpush.msra.mxu0 0.0
  %204 = vmatpush.msra.mxu0 %v182
  %205 = vmatmul.f32.gmra.mxu0 %v187
  %v206 = vpop.f32.mrf.mxu0
  %v207 = vadd.f32 0.0, %v206
  %208 = vdwg.mxu0
  %209 = vmatpush.msra.mxu0 0.0
  %210 = vmatpush.msra.mxu0 0.0
  %211 = vmatpush.msra.mxu0 0.0
  %212 = vmatpush.msra.mxu0 0.0
  %213 = vmatpush.msra.mxu0 0.0
  %214 = vmatpush.msra.mxu0 0.0
  %215 = vmatpush.msra.mxu0 0.0
  %216 = vmatpush.msra.mxu0 0.0
  %217 = vmatpush.msra.mxu0 0.0
  %218 = vmatpush.msra.mxu0 0.0
  %219 = vmatpush.msra.mxu0 0.0
  %220 = vmatpush.msra.mxu0 0.0
  %221 = vmatpush.msra.mxu0 0.0
  %222 = vmatpush.msra.mxu0 0.0
  %223 = vmatpush.msra.mxu0 0.0
  %224 = vmatpush.msra.mxu0 %v183
  %225 = vmatmul.f32.gmra.mxu0 %v187
  %v226 = vpop.f32.mrf.mxu0
  %v227 = vadd.f32 0.0, %v226
  %228 = vdwg.mxu0
  %v229 = vadd.f32 %v171, %v207
  %v230 = vadd.f32 %v172, %v227
  %231 = vrot.lane.b32.xlu0 %v51, 1
  %v232 = vpop.permute.xlu0 %231
  %233 = vrot.lane.b32.xlu0 %v52, 1
  %v234 = vpop.permute.xlu0 %233
  %vm235 = vcmp.lt.s32.totalorder %v21, 1
  %v236 = vsel %vm235, %v232, %v234
  %v237 = vsel %vm235, %v234, %v232
  %v238 = vmul.f32 %v237, %v31
  %v239 = vmul.f32 %v236, %v32
  %s240 = scalar_lea.vmem %s1, 24
  %v241 = vld [vmem:[%s240] sm:$0xff]
  %v243 = vsel %vm71, %v241, 0
  %245 = vmatpush.msra.mxu0 0.0
  %246 = vmatpush.msra.mxu0 0.0
  %247 = vmatpush.msra.mxu0 0.0
  %248 = vmatpush.msra.mxu0 0.0
  %249 = vmatpush.msra.mxu0 0.0
  %250 = vmatpush.msra.mxu0 0.0
  %251 = vmatpush.msra.mxu0 0.0
  %252 = vmatpush.msra.mxu0 0.0
  %253 = vmatpush.msra.mxu0 0.0
  %254 = vmatpush.msra.mxu0 0.0
  %255 = vmatpush.msra.mxu0 0.0
  %256 = vmatpush.msra.mxu0 0.0
  %257 = vmatpush.msra.mxu0 0.0
  %258 = vmatpush.msra.mxu0 0.0
  %259 = vmatpush.msra.mxu0 0.0
  %260 = vmatpush.msra.mxu0 %v238
  %261 = vmatmul.f32.gmra.mxu0 %v243
  %v262 = vpop.f32.mrf.mxu0
  %v263 = vadd.f32 0.0, %v262
  %264 = vdwg.mxu0
  %265 = vmatpush.msra.mxu0 0.0
  %266 = vmatpush.msra.mxu0 0.0
  %267 = vmatpush.msra.mxu0 0.0
  %268 = vmatpush.msra.mxu0 0.0
  %269 = vmatpush.msra.mxu0 0.0
  %270 = vmatpush.msra.mxu0 0.0
  %271 = vmatpush.msra.mxu0 0.0
  %272 = vmatpush.msra.mxu0 0.0
  %273 = vmatpush.msra.mxu0 0.0
  %274 = vmatpush.msra.mxu0 0.0
  %275 = vmatpush.msra.mxu0 0.0
  %276 = vmatpush.msra.mxu0 0.0
  %277 = vmatpush.msra.mxu0 0.0
  %278 = vmatpush.msra.mxu0 0.0
  %279 = vmatpush.msra.mxu0 0.0
  %280 = vmatpush.msra.mxu0 %v239
  %281 = vmatmul.f32.gmra.mxu0 %v243
  %v282 = vpop.f32.mrf.mxu0
  %v283 = vadd.f32 0.0, %v282
  %284 = vdwg.mxu0
  %v285 = vadd.f32 %v229, %v263
  %v286 = vadd.f32 %v230, %v283
  %s287 = scalar_lea.vmem %s1, 32
  %v288 = vld [vmem:[%s287] sm:$0xff]
  %v290 = vsel %vm71, %v288, 0
  %292 = vmatpush.msra.mxu0 0.0
  %293 = vmatpush.msra.mxu0 0.0
  %294 = vmatpush.msra.mxu0 0.0
  %295 = vmatpush.msra.mxu0 0.0
  %296 = vmatpush.msra.mxu0 0.0
  %297 = vmatpush.msra.mxu0 0.0
  %298 = vmatpush.msra.mxu0 0.0
  %299 = vmatpush.msra.mxu0 0.0
  %300 = vmatpush.msra.mxu0 0.0
  %301 = vmatpush.msra.mxu0 0.0
  %302 = vmatpush.msra.mxu0 0.0
  %303 = vmatpush.msra.mxu0 0.0
  %304 = vmatpush.msra.mxu0 0.0
  %305 = vmatpush.msra.mxu0 0.0
  %306 = vmatpush.msra.mxu0 0.0
  %307 = vmatpush.msra.mxu0 %v51
  %308 = vmatmul.f32.gmra.mxu0 %v290
  %v309 = vpop.f32.mrf.mxu0
  %v310 = vadd.f32 0.0, %v309
  %311 = vdwg.mxu0
  %312 = vmatpush.msra.mxu0 0.0
  %313 = vmatpush.msra.mxu0 0.0
  %314 = vmatpush.msra.mxu0 0.0
  %315 = vmatpush.msra.mxu0 0.0
  %316 = vmatpush.msra.mxu0 0.0
  %317 = vmatpush.msra.mxu0 0.0
  %318 = vmatpush.msra.mxu0 0.0
  %319 = vmatpush.msra.mxu0 0.0
  %320 = vmatpush.msra.mxu0 0.0
  %321 = vmatpush.msra.mxu0 0.0
  %322 = vmatpush.msra.mxu0 0.0
  %323 = vmatpush.msra.mxu0 0.0
  %324 = vmatpush.msra.mxu0 0.0
  %325 = vmatpush.msra.mxu0 0.0
  %326 = vmatpush.msra.mxu0 0.0
  %327 = vmatpush.msra.mxu0 %v52
  %328 = vmatmul.f32.gmra.mxu0 %v290
  %v329 = vpop.f32.mrf.mxu0
  %v330 = vadd.f32 0.0, %v329
  %331 = vdwg.mxu0
  %v332 = vadd.f32 %v285, %v310
  %v333 = vadd.f32 %v286, %v330
  %334 = vrot.lane.b32.xlu0 %v51, 127
  %v335 = vpop.permute.xlu0 %334
  %336 = vrot.lane.b32.xlu0 %v52, 127
  %v337 = vpop.permute.xlu0 %336
  %vm338 = vcmp.lt.s32.totalorder %v21, 127
  %v339 = vsel %vm338, %v335, %v337
  %v340 = vsel %vm338, %v337, %v335
  %v341 = vmul.f32 %v339, %v37
  %v342 = vmul.f32 %v340, %v38
  %s343 = scalar_lea.vmem %s1, 40
  %v344 = vld [vmem:[%s343] sm:$0xff]
  %v346 = vsel %vm71, %v344, 0
  %348 = vmatpush.msra.mxu0 0.0
  %349 = vmatpush.msra.mxu0 0.0
  %350 = vmatpush.msra.mxu0 0.0
  %351 = vmatpush.msra.mxu0 0.0
  %352 = vmatpush.msra.mxu0 0.0
  %353 = vmatpush.msra.mxu0 0.0
  %354 = vmatpush.msra.mxu0 0.0
  %355 = vmatpush.msra.mxu0 0.0
  %356 = vmatpush.msra.mxu0 0.0
  %357 = vmatpush.msra.mxu0 0.0
  %358 = vmatpush.msra.mxu0 0.0
  %359 = vmatpush.msra.mxu0 0.0
  %360 = vmatpush.msra.mxu0 0.0
  %361 = vmatpush.msra.mxu0 0.0
  %362 = vmatpush.msra.mxu0 0.0
  %363 = vmatpush.msra.mxu0 %v341
  %364 = vmatmul.f32.gmra.mxu0 %v346
  %v365 = vpop.f32.mrf.mxu0
  %v366 = vadd.f32 0.0, %v365
  %367 = vdwg.mxu0
  %368 = vmatpush.msra.mxu0 0.0
  %369 = vmatpush.msra.mxu0 0.0
  %370 = vmatpush.msra.mxu0 0.0
  %371 = vmatpush.msra.mxu0 0.0
  %372 = vmatpush.msra.mxu0 0.0
  %373 = vmatpush.msra.mxu0 0.0
  %374 = vmatpush.msra.mxu0 0.0
  %375 = vmatpush.msra.mxu0 0.0
  %376 = vmatpush.msra.mxu0 0.0
  %377 = vmatpush.msra.mxu0 0.0
  %378 = vmatpush.msra.mxu0 0.0
  %379 = vmatpush.msra.mxu0 0.0
  %380 = vmatpush.msra.mxu0 0.0
  %381 = vmatpush.msra.mxu0 0.0
  %382 = vmatpush.msra.mxu0 0.0
  %383 = vmatpush.msra.mxu0 %v342
  %384 = vmatmul.f32.gmra.mxu0 %v346
  %v385 = vpop.f32.mrf.mxu0
  %v386 = vadd.f32 0.0, %v385
  %387 = vdwg.mxu0
  %v388 = vadd.f32 %v332, %v366
  %v389 = vadd.f32 %v333, %v386
  %390 = vrot.lane.b32.xlu0 %v51, 113
  %v391 = vpop.permute.xlu0 %390
  %392 = vrot.lane.b32.xlu0 %v52, 113
  %v393 = vpop.permute.xlu0 %392
  %vm394 = vcmp.lt.s32.totalorder %v21, 113
  %v395 = vsel %vm394, %v391, %v393
  %v396 = vsel %vm394, %v393, %v391
  %v397 = vmul.f32 %v395, %v49
  %v398 = vmul.f32 %v396, %v50
  %v399 = vmul.f32 %v397, %v31
  %v400 = vmul.f32 %v398, %v32
  %s401 = scalar_lea.vmem %s1, 48
  %v402 = vld [vmem:[%s401] sm:$0xff]
  %v404 = vsel %vm71, %v402, 0
  %406 = vmatpush.msra.mxu0 0.0
  %407 = vmatpush.msra.mxu0 0.0
  %408 = vmatpush.msra.mxu0 0.0
  %409 = vmatpush.msra.mxu0 0.0
  %410 = vmatpush.msra.mxu0 0.0
  %411 = vmatpush.msra.mxu0 0.0
  %412 = vmatpush.msra.mxu0 0.0
  %413 = vmatpush.msra.mxu0 0.0
  %414 = vmatpush.msra.mxu0 0.0
  %415 = vmatpush.msra.mxu0 0.0
  %416 = vmatpush.msra.mxu0 0.0
  %417 = vmatpush.msra.mxu0 0.0
  %418 = vmatpush.msra.mxu0 0.0
  %419 = vmatpush.msra.mxu0 0.0
  %420 = vmatpush.msra.mxu0 0.0
  %421 = vmatpush.msra.mxu0 %v399
  %422 = vmatmul.f32.gmra.mxu0 %v404
  %v423 = vpop.f32.mrf.mxu0
  %v424 = vadd.f32 0.0, %v423
  %425 = vdwg.mxu0
  %426 = vmatpush.msra.mxu0 0.0
  %427 = vmatpush.msra.mxu0 0.0
  %428 = vmatpush.msra.mxu0 0.0
  %429 = vmatpush.msra.mxu0 0.0
  %430 = vmatpush.msra.mxu0 0.0
  %431 = vmatpush.msra.mxu0 0.0
  %432 = vmatpush.msra.mxu0 0.0
  %433 = vmatpush.msra.mxu0 0.0
  %434 = vmatpush.msra.mxu0 0.0
  %435 = vmatpush.msra.mxu0 0.0
  %436 = vmatpush.msra.mxu0 0.0
  %437 = vmatpush.msra.mxu0 0.0
  %438 = vmatpush.msra.mxu0 0.0
  %439 = vmatpush.msra.mxu0 0.0
  %440 = vmatpush.msra.mxu0 0.0
  %441 = vmatpush.msra.mxu0 %v400
  %442 = vmatmul.f32.gmra.mxu0 %v404
  %v443 = vpop.f32.mrf.mxu0
  %v444 = vadd.f32 0.0, %v443
  %445 = vdwg.mxu0
  %v446 = vadd.f32 %v388, %v424
  %v447 = vadd.f32 %v389, %v444
  %448 = vrot.lane.b32.xlu0 %v51, 112
  %v449 = vpop.permute.xlu0 %448
  %450 = vrot.lane.b32.xlu0 %v52, 112
  %v451 = vpop.permute.xlu0 %450
  %vm452 = vcmp.lt.s32.totalorder %v21, 112
  %v453 = vsel %vm452, %v449, %v451
  %v454 = vsel %vm452, %v451, %v449
  %v455 = vmul.f32 %v453, %v49
  %v456 = vmul.f32 %v454, %v50
  %s457 = scalar_lea.vmem %s1, 56
  %v458 = vld [vmem:[%s457] sm:$0xff]
  %v460 = vsel %vm71, %v458, 0
  %462 = vmatpush.msra.mxu0 0.0
  %463 = vmatpush.msra.mxu0 0.0
  %464 = vmatpush.msra.mxu0 0.0
  %465 = vmatpush.msra.mxu0 0.0
  %466 = vmatpush.msra.mxu0 0.0
  %467 = vmatpush.msra.mxu0 0.0
  %468 = vmatpush.msra.mxu0 0.0
  %469 = vmatpush.msra.mxu0 0.0
  %470 = vmatpush.msra.mxu0 0.0
  %471 = vmatpush.msra.mxu0 0.0
  %472 = vmatpush.msra.mxu0 0.0
  %473 = vmatpush.msra.mxu0 0.0
  %474 = vmatpush.msra.mxu0 0.0
  %475 = vmatpush.msra.mxu0 0.0
  %476 = vmatpush.msra.mxu0 0.0
  %477 = vmatpush.msra.mxu0 %v455
  %478 = vmatmul.f32.gmra.mxu0 %v460
  %v479 = vpop.f32.mrf.mxu0
  %v480 = vadd.f32 0.0, %v479
  %481 = vdwg.mxu0
  %482 = vmatpush.msra.mxu0 0.0
  %483 = vmatpush.msra.mxu0 0.0
  %484 = vmatpush.msra.mxu0 0.0
  %485 = vmatpush.msra.mxu0 0.0
  %486 = vmatpush.msra.mxu0 0.0
  %487 = vmatpush.msra.mxu0 0.0
  %488 = vmatpush.msra.mxu0 0.0
  %489 = vmatpush.msra.mxu0 0.0
  %490 = vmatpush.msra.mxu0 0.0
  %491 = vmatpush.msra.mxu0 0.0
  %492 = vmatpush.msra.mxu0 0.0
  %493 = vmatpush.msra.mxu0 0.0
  %494 = vmatpush.msra.mxu0 0.0
  %495 = vmatpush.msra.mxu0 0.0
  %496 = vmatpush.msra.mxu0 0.0
  %497 = vmatpush.msra.mxu0 %v456
  %498 = vmatmul.f32.gmra.mxu0 %v460
  %v499 = vpop.f32.mrf.mxu0
  %v500 = vadd.f32 0.0, %v499
  %501 = vdwg.mxu0
  %v502 = vadd.f32 %v446, %v480
  %v503 = vadd.f32 %v447, %v500
  %504 = vrot.lane.b32.xlu0 %v51, 111
  %v505 = vpop.permute.xlu0 %504
  %506 = vrot.lane.b32.xlu0 %v52, 111
  %v507 = vpop.permute.xlu0 %506
  %vm508 = vcmp.lt.s32.totalorder %v21, 111
  %v509 = vsel %vm508, %v505, %v507
  %v510 = vsel %vm508, %v507, %v505
  %v511 = vmul.f32 %v509, %v49
  %v512 = vmul.f32 %v510, %v50
  %v513 = vmul.f32 %v511, %v37
  %v514 = vmul.f32 %v512, %v38
  %s515 = scalar_lea.vmem %s1, 64
  %v516 = vld [vmem:[%s515] sm:$0xff]
  %v518 = vsel %vm71, %v516, 0
  %520 = vmatpush.msra.mxu0 0.0
  %521 = vmatpush.msra.mxu0 0.0
  %522 = vmatpush.msra.mxu0 0.0
  %523 = vmatpush.msra.mxu0 0.0
  %524 = vmatpush.msra.mxu0 0.0
  %525 = vmatpush.msra.mxu0 0.0
  %526 = vmatpush.msra.mxu0 0.0
  %527 = vmatpush.msra.mxu0 0.0
  %528 = vmatpush.msra.mxu0 0.0
  %529 = vmatpush.msra.mxu0 0.0
  %530 = vmatpush.msra.mxu0 0.0
  %531 = vmatpush.msra.mxu0 0.0
  %532 = vmatpush.msra.mxu0 0.0
  %533 = vmatpush.msra.mxu0 0.0
  %534 = vmatpush.msra.mxu0 0.0
  %535 = vmatpush.msra.mxu0 %v513
  %536 = vmatmul.f32.gmra.mxu0 %v518
  %v537 = vpop.f32.mrf.mxu0
  %v538 = vadd.f32 0.0, %v537
  %539 = vdwg.mxu0
  %540 = vmatpush.msra.mxu0 0.0
  %541 = vmatpush.msra.mxu0 0.0
  %542 = vmatpush.msra.mxu0 0.0
  %543 = vmatpush.msra.mxu0 0.0
  %544 = vmatpush.msra.mxu0 0.0
  %545 = vmatpush.msra.mxu0 0.0
  %546 = vmatpush.msra.mxu0 0.0
  %547 = vmatpush.msra.mxu0 0.0
  %548 = vmatpush.msra.mxu0 0.0
  %549 = vmatpush.msra.mxu0 0.0
  %550 = vmatpush.msra.mxu0 0.0
  %551 = vmatpush.msra.mxu0 0.0
  %552 = vmatpush.msra.mxu0 0.0
  %553 = vmatpush.msra.mxu0 0.0
  %554 = vmatpush.msra.mxu0 0.0
  %555 = vmatpush.msra.mxu0 %v514
  %556 = vmatmul.f32.gmra.mxu0 %v518
  %v557 = vpop.f32.mrf.mxu0
  %v558 = vadd.f32 0.0, %v557
  %559 = vdwg.mxu0
  %v560 = vadd.f32 %v502, %v538
  %v561 = vadd.f32 %v503, %v558
  %v562 = vmax.f32 %v560, 0.0
  %v563 = vmax.f32 %v561, 0.0
  %v564 = vld [vmem:[%s4] sm:$0xff]
  %566 = vset.pattern.permute.xlu0 0
  %567 = vperm.xlu0 %566, %v564
  %v568 = vpop.permute.xlu0 %567
  %570 = vrot.lane.b32.xlu0 %v562, 17
  %v571 = vpop.permute.xlu0 %570
  %572 = vrot.lane.b32.xlu0 %v563, 17
  %v573 = vpop.permute.xlu0 %572
  %v574 = vsel %vm63, %v571, %v573
  %v575 = vsel %vm63, %v573, %v571
  %v576 = vmul.f32 %v575, %v43
  %v577 = vmul.f32 %v574, %v44
  %v578 = vmul.f32 %v576, %v31
  %v579 = vmul.f32 %v577, %v32
  %v580 = vld [vmem:[%s3] sm:$0xff]
  %v582 = vsel %vm71, %v580, 0
  %584 = vmatpush.msra.mxu0 0.0
  %585 = vmatpush.msra.mxu0 0.0
  %586 = vmatpush.msra.mxu0 0.0
  %587 = vmatpush.msra.mxu0 0.0
  %588 = vmatpush.msra.mxu0 0.0
  %589 = vmatpush.msra.mxu0 0.0
  %590 = vmatpush.msra.mxu0 0.0
  %591 = vmatpush.msra.mxu0 0.0
  %592 = vmatpush.msra.mxu0 0.0
  %593 = vmatpush.msra.mxu0 0.0
  %594 = vmatpush.msra.mxu0 0.0
  %595 = vmatpush.msra.mxu0 0.0
  %596 = vmatpush.msra.mxu0 0.0
  %597 = vmatpush.msra.mxu0 0.0
  %598 = vmatpush.msra.mxu0 0.0
  %599 = vmatpush.msra.mxu0 %v578
  %600 = vmatmul.f32.gmra.mxu0 %v582
  %v601 = vpop.f32.mrf.mxu0
  %v602 = vadd.f32 0.0, %v601
  %603 = vdwg.mxu0
  %604 = vmatpush.msra.mxu0 0.0
  %605 = vmatpush.msra.mxu0 0.0
  %606 = vmatpush.msra.mxu0 0.0
  %607 = vmatpush.msra.mxu0 0.0
  %608 = vmatpush.msra.mxu0 0.0
  %609 = vmatpush.msra.mxu0 0.0
  %610 = vmatpush.msra.mxu0 0.0
  %611 = vmatpush.msra.mxu0 0.0
  %612 = vmatpush.msra.mxu0 0.0
  %613 = vmatpush.msra.mxu0 0.0
  %614 = vmatpush.msra.mxu0 0.0
  %615 = vmatpush.msra.mxu0 0.0
  %616 = vmatpush.msra.mxu0 0.0
  %617 = vmatpush.msra.mxu0 0.0
  %618 = vmatpush.msra.mxu0 0.0
  %619 = vmatpush.msra.mxu0 %v579
  %620 = vmatmul.f32.gmra.mxu0 %v582
  %v621 = vpop.f32.mrf.mxu0
  %v622 = vadd.f32 0.0, %v621
  %623 = vdwg.mxu0
  %v624 = vadd.f32 %v568, %v602
  %v625 = vadd.f32 %v568, %v622
  %626 = vrot.lane.b32.xlu0 %v562, 16
  %v627 = vpop.permute.xlu0 %626
  %628 = vrot.lane.b32.xlu0 %v563, 16
  %v629 = vpop.permute.xlu0 %628
  %v630 = vsel %vm121, %v627, %v629
  %v631 = vsel %vm121, %v629, %v627
  %v632 = vmul.f32 %v631, %v43
  %v633 = vmul.f32 %v630, %v44
  %s634 = scalar_lea.vmem %s3, 8
  %v635 = vld [vmem:[%s634] sm:$0xff]
  %v637 = vsel %vm71, %v635, 0
  %639 = vmatpush.msra.mxu0 0.0
  %640 = vmatpush.msra.mxu0 0.0
  %641 = vmatpush.msra.mxu0 0.0
  %642 = vmatpush.msra.mxu0 0.0
  %643 = vmatpush.msra.mxu0 0.0
  %644 = vmatpush.msra.mxu0 0.0
  %645 = vmatpush.msra.mxu0 0.0
  %646 = vmatpush.msra.mxu0 0.0
  %647 = vmatpush.msra.mxu0 0.0
  %648 = vmatpush.msra.mxu0 0.0
  %649 = vmatpush.msra.mxu0 0.0
  %650 = vmatpush.msra.mxu0 0.0
  %651 = vmatpush.msra.mxu0 0.0
  %652 = vmatpush.msra.mxu0 0.0
  %653 = vmatpush.msra.mxu0 0.0
  %654 = vmatpush.msra.mxu0 %v632
  %655 = vmatmul.f32.gmra.mxu0 %v637
  %v656 = vpop.f32.mrf.mxu0
  %v657 = vadd.f32 0.0, %v656
  %658 = vdwg.mxu0
  %659 = vmatpush.msra.mxu0 0.0
  %660 = vmatpush.msra.mxu0 0.0
  %661 = vmatpush.msra.mxu0 0.0
  %662 = vmatpush.msra.mxu0 0.0
  %663 = vmatpush.msra.mxu0 0.0
  %664 = vmatpush.msra.mxu0 0.0
  %665 = vmatpush.msra.mxu0 0.0
  %666 = vmatpush.msra.mxu0 0.0
  %667 = vmatpush.msra.mxu0 0.0
  %668 = vmatpush.msra.mxu0 0.0
  %669 = vmatpush.msra.mxu0 0.0
  %670 = vmatpush.msra.mxu0 0.0
  %671 = vmatpush.msra.mxu0 0.0
  %672 = vmatpush.msra.mxu0 0.0
  %673 = vmatpush.msra.mxu0 0.0
  %674 = vmatpush.msra.mxu0 %v633
  %675 = vmatmul.f32.gmra.mxu0 %v637
  %v676 = vpop.f32.mrf.mxu0
  %v677 = vadd.f32 0.0, %v676
  %678 = vdwg.mxu0
  %v679 = vadd.f32 %v624, %v657
  %v680 = vadd.f32 %v625, %v677
  %681 = vrot.lane.b32.xlu0 %v562, 15
  %v682 = vpop.permute.xlu0 %681
  %683 = vrot.lane.b32.xlu0 %v563, 15
  %v684 = vpop.permute.xlu0 %683
  %v685 = vsel %vm177, %v682, %v684
  %v686 = vsel %vm177, %v684, %v682
  %v687 = vmul.f32 %v686, %v43
  %v688 = vmul.f32 %v685, %v44
  %v689 = vmul.f32 %v687, %v37
  %v690 = vmul.f32 %v688, %v38
  %s691 = scalar_lea.vmem %s3, 16
  %v692 = vld [vmem:[%s691] sm:$0xff]
  %v694 = vsel %vm71, %v692, 0
  %696 = vmatpush.msra.mxu0 0.0
  %697 = vmatpush.msra.mxu0 0.0
  %698 = vmatpush.msra.mxu0 0.0
  %699 = vmatpush.msra.mxu0 0.0
  %700 = vmatpush.msra.mxu0 0.0
  %701 = vmatpush.msra.mxu0 0.0
  %702 = vmatpush.msra.mxu0 0.0
  %703 = vmatpush.msra.mxu0 0.0
  %704 = vmatpush.msra.mxu0 0.0
  %705 = vmatpush.msra.mxu0 0.0
  %706 = vmatpush.msra.mxu0 0.0
  %707 = vmatpush.msra.mxu0 0.0
  %708 = vmatpush.msra.mxu0 0.0
  %709 = vmatpush.msra.mxu0 0.0
  %710 = vmatpush.msra.mxu0 0.0
  %711 = vmatpush.msra.mxu0 %v689
  %712 = vmatmul.f32.gmra.mxu0 %v694
  %v713 = vpop.f32.mrf.mxu0
  %v714 = vadd.f32 0.0, %v713
  %715 = vdwg.mxu0
  %716 = vmatpush.msra.mxu0 0.0
  %717 = vmatpush.msra.mxu0 0.0
  %718 = vmatpush.msra.mxu0 0.0
  %719 = vmatpush.msra.mxu0 0.0
  %720 = vmatpush.msra.mxu0 0.0
  %721 = vmatpush.msra.mxu0 0.0
  %722 = vmatpush.msra.mxu0 0.0
  %723 = vmatpush.msra.mxu0 0.0
  %724 = vmatpush.msra.mxu0 0.0
  %725 = vmatpush.msra.mxu0 0.0
  %726 = vmatpush.msra.mxu0 0.0
  %727 = vmatpush.msra.mxu0 0.0
  %728 = vmatpush.msra.mxu0 0.0
  %729 = vmatpush.msra.mxu0 0.0
  %730 = vmatpush.msra.mxu0 0.0
  %731 = vmatpush.msra.mxu0 %v690
  %732 = vmatmul.f32.gmra.mxu0 %v694
  %v733 = vpop.f32.mrf.mxu0
  %v734 = vadd.f32 0.0, %v733
  %735 = vdwg.mxu0
  %v736 = vadd.f32 %v679, %v714
  %v737 = vadd.f32 %v680, %v734
  %738 = vrot.lane.b32.xlu0 %v562, 1
  %v739 = vpop.permute.xlu0 %738
  %740 = vrot.lane.b32.xlu0 %v563, 1
  %v741 = vpop.permute.xlu0 %740
  %v742 = vsel %vm235, %v739, %v741
  %v743 = vsel %vm235, %v741, %v739
  %v744 = vmul.f32 %v743, %v31
  %v745 = vmul.f32 %v742, %v32
  %s746 = scalar_lea.vmem %s3, 24
  %v747 = vld [vmem:[%s746] sm:$0xff]
  %v749 = vsel %vm71, %v747, 0
  %751 = vmatpush.msra.mxu0 0.0
  %752 = vmatpush.msra.mxu0 0.0
  %753 = vmatpush.msra.mxu0 0.0
  %754 = vmatpush.msra.mxu0 0.0
  %755 = vmatpush.msra.mxu0 0.0
  %756 = vmatpush.msra.mxu0 0.0
  %757 = vmatpush.msra.mxu0 0.0
  %758 = vmatpush.msra.mxu0 0.0
  %759 = vmatpush.msra.mxu0 0.0
  %760 = vmatpush.msra.mxu0 0.0
  %761 = vmatpush.msra.mxu0 0.0
  %762 = vmatpush.msra.mxu0 0.0
  %763 = vmatpush.msra.mxu0 0.0
  %764 = vmatpush.msra.mxu0 0.0
  %765 = vmatpush.msra.mxu0 0.0
  %766 = vmatpush.msra.mxu0 %v744
  %767 = vmatmul.f32.gmra.mxu0 %v749
  %v768 = vpop.f32.mrf.mxu0
  %v769 = vadd.f32 0.0, %v768
  %770 = vdwg.mxu0
  %771 = vmatpush.msra.mxu0 0.0
  %772 = vmatpush.msra.mxu0 0.0
  %773 = vmatpush.msra.mxu0 0.0
  %774 = vmatpush.msra.mxu0 0.0
  %775 = vmatpush.msra.mxu0 0.0
  %776 = vmatpush.msra.mxu0 0.0
  %777 = vmatpush.msra.mxu0 0.0
  %778 = vmatpush.msra.mxu0 0.0
  %779 = vmatpush.msra.mxu0 0.0
  %780 = vmatpush.msra.mxu0 0.0
  %781 = vmatpush.msra.mxu0 0.0
  %782 = vmatpush.msra.mxu0 0.0
  %783 = vmatpush.msra.mxu0 0.0
  %784 = vmatpush.msra.mxu0 0.0
  %785 = vmatpush.msra.mxu0 0.0
  %786 = vmatpush.msra.mxu0 %v745
  %787 = vmatmul.f32.gmra.mxu0 %v749
  %v788 = vpop.f32.mrf.mxu0
  %v789 = vadd.f32 0.0, %v788
  %790 = vdwg.mxu0
  %v791 = vadd.f32 %v736, %v769
  %v792 = vadd.f32 %v737, %v789
  %s793 = scalar_lea.vmem %s3, 32
  %v794 = vld [vmem:[%s793] sm:$0xff]
  %v796 = vsel %vm71, %v794, 0
  %798 = vmatpush.msra.mxu0 0.0
  %799 = vmatpush.msra.mxu0 0.0
  %800 = vmatpush.msra.mxu0 0.0
  %801 = vmatpush.msra.mxu0 0.0
  %802 = vmatpush.msra.mxu0 0.0
  %803 = vmatpush.msra.mxu0 0.0
  %804 = vmatpush.msra.mxu0 0.0
  %805 = vmatpush.msra.mxu0 0.0
  %806 = vmatpush.msra.mxu0 0.0
  %807 = vmatpush.msra.mxu0 0.0
  %808 = vmatpush.msra.mxu0 0.0
  %809 = vmatpush.msra.mxu0 0.0
  %810 = vmatpush.msra.mxu0 0.0
  %811 = vmatpush.msra.mxu0 0.0
  %812 = vmatpush.msra.mxu0 0.0
  %813 = vmatpush.msra.mxu0 %v562
  %814 = vmatmul.f32.gmra.mxu0 %v796
  %v815 = vpop.f32.mrf.mxu0
  %v816 = vadd.f32 0.0, %v815
  %817 = vdwg.mxu0
  %818 = vmatpush.msra.mxu0 0.0
  %819 = vmatpush.msra.mxu0 0.0
  %820 = vmatpush.msra.mxu0 0.0
  %821 = vmatpush.msra.mxu0 0.0
  %822 = vmatpush.msra.mxu0 0.0
  %823 = vmatpush.msra.mxu0 0.0
  %824 = vmatpush.msra.mxu0 0.0
  %825 = vmatpush.msra.mxu0 0.0
  %826 = vmatpush.msra.mxu0 0.0
  %827 = vmatpush.msra.mxu0 0.0
  %828 = vmatpush.msra.mxu0 0.0
  %829 = vmatpush.msra.mxu0 0.0
  %830 = vmatpush.msra.mxu0 0.0
  %831 = vmatpush.msra.mxu0 0.0
  %832 = vmatpush.msra.mxu0 0.0
  %833 = vmatpush.msra.mxu0 %v563
  %834 = vmatmul.f32.gmra.mxu0 %v796
  %v835 = vpop.f32.mrf.mxu0
  %v836 = vadd.f32 0.0, %v835
  %837 = vdwg.mxu0
  %v838 = vadd.f32 %v791, %v816
  %v839 = vadd.f32 %v792, %v836
  %840 = vrot.lane.b32.xlu0 %v562, 127
  %v841 = vpop.permute.xlu0 %840
  %842 = vrot.lane.b32.xlu0 %v563, 127
  %v843 = vpop.permute.xlu0 %842
  %v844 = vsel %vm338, %v841, %v843
  %v845 = vsel %vm338, %v843, %v841
  %v846 = vmul.f32 %v844, %v37
  %v847 = vmul.f32 %v845, %v38
  %s848 = scalar_lea.vmem %s3, 40
  %v849 = vld [vmem:[%s848] sm:$0xff]
  %v851 = vsel %vm71, %v849, 0
  %853 = vmatpush.msra.mxu0 0.0
  %854 = vmatpush.msra.mxu0 0.0
  %855 = vmatpush.msra.mxu0 0.0
  %856 = vmatpush.msra.mxu0 0.0
  %857 = vmatpush.msra.mxu0 0.0
  %858 = vmatpush.msra.mxu0 0.0
  %859 = vmatpush.msra.mxu0 0.0
  %860 = vmatpush.msra.mxu0 0.0
  %861 = vmatpush.msra.mxu0 0.0
  %862 = vmatpush.msra.mxu0 0.0
  %863 = vmatpush.msra.mxu0 0.0
  %864 = vmatpush.msra.mxu0 0.0
  %865 = vmatpush.msra.mxu0 0.0
  %866 = vmatpush.msra.mxu0 0.0
  %867 = vmatpush.msra.mxu0 0.0
  %868 = vmatpush.msra.mxu0 %v846
  %869 = vmatmul.f32.gmra.mxu0 %v851
  %v870 = vpop.f32.mrf.mxu0
  %v871 = vadd.f32 0.0, %v870
  %872 = vdwg.mxu0
  %873 = vmatpush.msra.mxu0 0.0
  %874 = vmatpush.msra.mxu0 0.0
  %875 = vmatpush.msra.mxu0 0.0
  %876 = vmatpush.msra.mxu0 0.0
  %877 = vmatpush.msra.mxu0 0.0
  %878 = vmatpush.msra.mxu0 0.0
  %879 = vmatpush.msra.mxu0 0.0
  %880 = vmatpush.msra.mxu0 0.0
  %881 = vmatpush.msra.mxu0 0.0
  %882 = vmatpush.msra.mxu0 0.0
  %883 = vmatpush.msra.mxu0 0.0
  %884 = vmatpush.msra.mxu0 0.0
  %885 = vmatpush.msra.mxu0 0.0
  %886 = vmatpush.msra.mxu0 0.0
  %887 = vmatpush.msra.mxu0 0.0
  %888 = vmatpush.msra.mxu0 %v847
  %889 = vmatmul.f32.gmra.mxu0 %v851
  %v890 = vpop.f32.mrf.mxu0
  %v891 = vadd.f32 0.0, %v890
  %892 = vdwg.mxu0
  %v893 = vadd.f32 %v838, %v871
  %v894 = vadd.f32 %v839, %v891
  %895 = vrot.lane.b32.xlu0 %v562, 113
  %v896 = vpop.permute.xlu0 %895
  %897 = vrot.lane.b32.xlu0 %v563, 113
  %v898 = vpop.permute.xlu0 %897
  %v899 = vsel %vm394, %v896, %v898
  %v900 = vsel %vm394, %v898, %v896
  %v901 = vmul.f32 %v899, %v49
  %v902 = vmul.f32 %v900, %v50
  %v903 = vmul.f32 %v901, %v31
  %v904 = vmul.f32 %v902, %v32
  %s905 = scalar_lea.vmem %s3, 48
  %v906 = vld [vmem:[%s905] sm:$0xff]
  %v908 = vsel %vm71, %v906, 0
  %910 = vmatpush.msra.mxu0 0.0
  %911 = vmatpush.msra.mxu0 0.0
  %912 = vmatpush.msra.mxu0 0.0
  %913 = vmatpush.msra.mxu0 0.0
  %914 = vmatpush.msra.mxu0 0.0
  %915 = vmatpush.msra.mxu0 0.0
  %916 = vmatpush.msra.mxu0 0.0
  %917 = vmatpush.msra.mxu0 0.0
  %918 = vmatpush.msra.mxu0 0.0
  %919 = vmatpush.msra.mxu0 0.0
  %920 = vmatpush.msra.mxu0 0.0
  %921 = vmatpush.msra.mxu0 0.0
  %922 = vmatpush.msra.mxu0 0.0
  %923 = vmatpush.msra.mxu0 0.0
  %924 = vmatpush.msra.mxu0 0.0
  %925 = vmatpush.msra.mxu0 %v903
  %926 = vmatmul.f32.gmra.mxu0 %v908
  %v927 = vpop.f32.mrf.mxu0
  %v928 = vadd.f32 0.0, %v927
  %929 = vdwg.mxu0
  %930 = vmatpush.msra.mxu0 0.0
  %931 = vmatpush.msra.mxu0 0.0
  %932 = vmatpush.msra.mxu0 0.0
  %933 = vmatpush.msra.mxu0 0.0
  %934 = vmatpush.msra.mxu0 0.0
  %935 = vmatpush.msra.mxu0 0.0
  %936 = vmatpush.msra.mxu0 0.0
  %937 = vmatpush.msra.mxu0 0.0
  %938 = vmatpush.msra.mxu0 0.0
  %939 = vmatpush.msra.mxu0 0.0
  %940 = vmatpush.msra.mxu0 0.0
  %941 = vmatpush.msra.mxu0 0.0
  %942 = vmatpush.msra.mxu0 0.0
  %943 = vmatpush.msra.mxu0 0.0
  %944 = vmatpush.msra.mxu0 0.0
  %945 = vmatpush.msra.mxu0 %v904
  %946 = vmatmul.f32.gmra.mxu0 %v908
  %v947 = vpop.f32.mrf.mxu0
  %v948 = vadd.f32 0.0, %v947
  %949 = vdwg.mxu0
  %v950 = vadd.f32 %v893, %v928
  %v951 = vadd.f32 %v894, %v948
  %952 = vrot.lane.b32.xlu0 %v562, 112
  %v953 = vpop.permute.xlu0 %952
  %954 = vrot.lane.b32.xlu0 %v563, 112
  %v955 = vpop.permute.xlu0 %954
  %v956 = vsel %vm452, %v953, %v955
  %v957 = vsel %vm452, %v955, %v953
  %v958 = vmul.f32 %v956, %v49
  %v959 = vmul.f32 %v957, %v50
  %s960 = scalar_lea.vmem %s3, 56
  %v961 = vld [vmem:[%s960] sm:$0xff]
  %v963 = vsel %vm71, %v961, 0
  %965 = vmatpush.msra.mxu0 0.0
  %966 = vmatpush.msra.mxu0 0.0
  %967 = vmatpush.msra.mxu0 0.0
  %968 = vmatpush.msra.mxu0 0.0
  %969 = vmatpush.msra.mxu0 0.0
  %970 = vmatpush.msra.mxu0 0.0
  %971 = vmatpush.msra.mxu0 0.0
  %972 = vmatpush.msra.mxu0 0.0
  %973 = vmatpush.msra.mxu0 0.0
  %974 = vmatpush.msra.mxu0 0.0
  %975 = vmatpush.msra.mxu0 0.0
  %976 = vmatpush.msra.mxu0 0.0
  %977 = vmatpush.msra.mxu0 0.0
  %978 = vmatpush.msra.mxu0 0.0
  %979 = vmatpush.msra.mxu0 0.0
  %980 = vmatpush.msra.mxu0 %v958
  %981 = vmatmul.f32.gmra.mxu0 %v963
  %v982 = vpop.f32.mrf.mxu0
  %v983 = vadd.f32 0.0, %v982
  %984 = vdwg.mxu0
  %985 = vmatpush.msra.mxu0 0.0
  %986 = vmatpush.msra.mxu0 0.0
  %987 = vmatpush.msra.mxu0 0.0
  %988 = vmatpush.msra.mxu0 0.0
  %989 = vmatpush.msra.mxu0 0.0
  %990 = vmatpush.msra.mxu0 0.0
  %991 = vmatpush.msra.mxu0 0.0
  %992 = vmatpush.msra.mxu0 0.0
  %993 = vmatpush.msra.mxu0 0.0
  %994 = vmatpush.msra.mxu0 0.0
  %995 = vmatpush.msra.mxu0 0.0
  %996 = vmatpush.msra.mxu0 0.0
  %997 = vmatpush.msra.mxu0 0.0
  %998 = vmatpush.msra.mxu0 0.0
  %999 = vmatpush.msra.mxu0 0.0
  %1000 = vmatpush.msra.mxu0 %v959
  %1001 = vmatmul.f32.gmra.mxu0 %v963
  %v1002 = vpop.f32.mrf.mxu0
  %v1003 = vadd.f32 0.0, %v1002
  %1004 = vdwg.mxu0
  %v1005 = vadd.f32 %v950, %v983
  %v1006 = vadd.f32 %v951, %v1003
  %1007 = vrot.lane.b32.xlu0 %v562, 111
  %v1008 = vpop.permute.xlu0 %1007
  %1009 = vrot.lane.b32.xlu0 %v563, 111
  %v1010 = vpop.permute.xlu0 %1009
  %v1011 = vsel %vm508, %v1008, %v1010
  %v1012 = vsel %vm508, %v1010, %v1008
  %v1013 = vmul.f32 %v1011, %v49
  %v1014 = vmul.f32 %v1012, %v50
  %v1015 = vmul.f32 %v1013, %v37
  %v1016 = vmul.f32 %v1014, %v38
  %s1017 = scalar_lea.vmem %s3, 64
  %v1018 = vld [vmem:[%s1017] sm:$0xff]
  %v1020 = vsel %vm71, %v1018, 0
  %1022 = vmatpush.msra.mxu0 0.0
  %1023 = vmatpush.msra.mxu0 0.0
  %1024 = vmatpush.msra.mxu0 0.0
  %1025 = vmatpush.msra.mxu0 0.0
  %1026 = vmatpush.msra.mxu0 0.0
  %1027 = vmatpush.msra.mxu0 0.0
  %1028 = vmatpush.msra.mxu0 0.0
  %1029 = vmatpush.msra.mxu0 0.0
  %1030 = vmatpush.msra.mxu0 0.0
  %1031 = vmatpush.msra.mxu0 0.0
  %1032 = vmatpush.msra.mxu0 0.0
  %1033 = vmatpush.msra.mxu0 0.0
  %1034 = vmatpush.msra.mxu0 0.0
  %1035 = vmatpush.msra.mxu0 0.0
  %1036 = vmatpush.msra.mxu0 0.0
  %1037 = vmatpush.msra.mxu0 %v1015
  %1038 = vmatmul.f32.gmra.mxu0 %v1020
  %v1039 = vpop.f32.mrf.mxu0
  %v1040 = vadd.f32 0.0, %v1039
  %1041 = vdwg.mxu0
  %1042 = vmatpush.msra.mxu0 0.0
  %1043 = vmatpush.msra.mxu0 0.0
  %1044 = vmatpush.msra.mxu0 0.0
  %1045 = vmatpush.msra.mxu0 0.0
  %1046 = vmatpush.msra.mxu0 0.0
  %1047 = vmatpush.msra.mxu0 0.0
  %1048 = vmatpush.msra.mxu0 0.0
  %1049 = vmatpush.msra.mxu0 0.0
  %1050 = vmatpush.msra.mxu0 0.0
  %1051 = vmatpush.msra.mxu0 0.0
  %1052 = vmatpush.msra.mxu0 0.0
  %1053 = vmatpush.msra.mxu0 0.0
  %1054 = vmatpush.msra.mxu0 0.0
  %1055 = vmatpush.msra.mxu0 0.0
  %1056 = vmatpush.msra.mxu0 0.0
  %1057 = vmatpush.msra.mxu0 %v1016
  %1058 = vmatmul.f32.gmra.mxu0 %v1020
  %v1059 = vpop.f32.mrf.mxu0
  %v1060 = vadd.f32 0.0, %v1059
  %1061 = vdwg.mxu0
  %v1062 = vadd.f32 %v1005, %v1040
  %v1063 = vadd.f32 %v1006, %v1060
  %v1064 = vadd.f32 %v1062, %v51
  %v1065 = vadd.f32 %v1063, %v52
  %1066 = vst [vmem:[%s5] sm:$0xff] %v1064
  %1067 = vst [vmem:[%s5 + $0x8] sm:$0xff] %v1065
  // Predicated region
  $region22: #{resblock_forward.1} parent=0 // pred_check
    _
  $region23: #{resblock_forward.1} parent=0 // pred_check_branch
    %1069 = sbr.rel (0) target = $region25
  $region24: #{resblock_forward.1} parent=0 // pred_region
    _
  $region25: #{resblock_forward.1} parent=0 // pred_fallthru
    _
  // Predicated region
  $region26: #{resblock_forward.1} parent=0 // pred_check
    _
  $region27: #{resblock_forward.1} parent=0 // pred_check_branch
    %1071 = sbr.rel (0) target = $region29
  $region28: #{resblock_forward.1} parent=0 // pred_region
    _
  $region29: #{resblock_forward.1} parent=0 // pred_fallthru
    _

</llo_original>
